<compile_context>
chip_gen: v6e
topology: v6e:2x2x1
jax: 0.10.0
libtpu: 0.0.40
codegen_flags: <defaults>
</compile_context>

<pallas_src>
import functools
import math

import jax
import jax.numpy as jnp
from jax.experimental import pallas as pl
from jax.experimental.pallas import tpu as pltpu

C0 = 0.28209479177387814
C1 = 0.4886025119029199
C2 = [1.0925484305920792, -1.0925484305920792, 0.31539156525252005,
      -1.0925484305920792, 0.5462742152960396]
C3 = [-0.5900435899266435, 2.890611442640554, -0.4570457994644658,
      0.3731763325901154, -0.4570457994644658, 1.445305721320277,
      -0.5900435899266435]
C4 = [2.5033429417967046, -1.7701307697799304, 0.9461746957575601,
      -0.6690465435572892, 0.10578554691520431, -0.6690465435572892,
      0.47308734787878004, -1.7701307697799304, 0.6258357354491761]

LANE = 128


def _round_up(v, mult):
    return ((v + mult - 1) // mult) * mult


def _sh_kernel(xyz_ref, out_ref, *, degree):
    # xyz_ref: (3, TM, 128)   -- x/y/z on the leading axis, full vreg tiles.
    # out_ref: (out_dim, TM, 128)
    odt = out_ref.dtype
    x = xyz_ref[0].astype(jnp.float32)
    y = xyz_ref[1].astype(jnp.float32)
    z = xyz_ref[2].astype(jnp.float32)

    def put(k, v):
        # Direct per-row store into the output tile (no concat temporary).
        out_ref[k] = v.astype(odt)

    put(0, jnp.full_like(x, C0))
    if degree > 1:
        put(1, -C1 * y)
        put(2, C1 * z)
        put(3, -C1 * x)
        if degree > 2:
            xx, yy, zz = x * x, y * y, z * z
            xy, yz, xz = x * y, y * z, x * z
            xx_m_yy = xx - yy                       # shared subexpression
            put(4, C2[0] * xy)
            put(5, C2[1] * yz)
            put(6, C2[2] * (2.0 * zz - xx - yy))
            put(7, C2[3] * xz)
            put(8, C2[4] * xx_m_yy)
            if degree > 3:
                t3xx_m_yy = 3.0 * xx - yy           # shared
                txx_m_3yy = xx - 3.0 * yy           # shared
                t4zz = 4.0 * zz - xx - yy           # shared
                put(9,  C3[0] * y * t3xx_m_yy)
                put(10, C3[1] * xy * z)
                put(11, C3[2] * y * t4zz)
                put(12, C3[3] * z * (2.0 * zz - 3.0 * xx - 3.0 * yy))
                put(13, C3[4] * x * t4zz)
                put(14, C3[5] * z * xx_m_yy)
                put(15, C3[6] * x * txx_m_3yy)
                if degree > 4:
                    t7zz_m_1 = 7.0 * zz - 1.0       # shared
                    t7zz_m_3 = 7.0 * zz - 3.0       # shared
                    put(16, C4[0] * xy * xx_m_yy)
                    put(17, C4[1] * yz * t3xx_m_yy)
                    put(18, C4[2] * xy * t7zz_m_1)
                    put(19, C4[3] * yz * t7zz_m_3)
                    put(20, C4[4] * (zz * (35.0 * zz - 30.0) + 3.0))
                    put(21, C4[5] * xz * t7zz_m_3)
                    put(22, C4[6] * xx_m_yy * t7zz_m_1)
                    put(23, C4[7] * xz * txx_m_3yy)
                    put(24, C4[8] * (xx * txx_m_3yy - yy * t3xx_m_yy))


def sh_encode(inp, degree=4, tile_m=512, out_dtype=None, sh_major=False):
    """Pallas SHEncoder forward.

    inp: (..., 3).
    Default return: (..., degree**2) in `out_dtype` (defaults to inp.dtype),
    matching the PyTorch module.
    sh_major=True returns (degree**2, N) with N = prod(batch dims) — the
    SH-major layout that skips the wrapper-side output transpose (preferred
    for consumers that contract over the SH axis next).

    tile_m: 128-point rows per grid step (512 => 65536 points / step,
    ~7.3 MiB of double-buffered VMEM blocks at f32 degree 5).
    """
    assert inp.shape[-1] == 3
    assert 1 <= degree <= 5
    out_dim = degree ** 2
    out_dtype = inp.dtype if out_dtype is None else jnp.dtype(out_dtype)
    batch_shape = inp.shape[:-1]
    n = math.prod(batch_shape) if batch_shape else 1

    in_item = jnp.dtype(inp.dtype).itemsize
    out_item = jnp.dtype(out_dtype).itemsize

    # ---- Tile geometry: point axis padded to (m_pad rows) x (128 lanes). ----
    m = pl.cdiv(n, LANE)                      # number of 128-point rows
    tile_m = max(8, _round_up(int(tile_m), 8))
    tm = min(tile_m, _round_up(m, 8))
    # v7x megacore: make sure there are >= 2 grid steps when there is enough
    # work, so ("parallel",) can shard across both TensorCores.
    if m > 8 and _round_up(m, 8) <= tm:
        tm = _round_up(pl.cdiv(m, 2), 8)

    def _block_bytes(t):
        return (3 * in_item + out_dim * out_item) * t * LANE

    # Keep the double-buffered working set comfortably inside v7x's 64 MiB
    # physical VMEM (v5e/v6e have 128 MiB, so this is safe everywhere).
    while tm > 8 and 2 * _block_bytes(tm) > (36 << 20):
        tm = max(8, _round_up(tm // 2, 8))

    m_pad = _round_up(m, tm)
    n_pad = m_pad * LANE

    xyz = inp.reshape(n, 3)
    if n_pad != n:
        xyz = jnp.pad(xyz, ((0, n_pad - n), (0, 0)))
    # (n_pad, 3) -> (3, m_pad, 128): xyz on leading axis, points lane-dense.
    # TODO(synk): an in-kernel de-interleave of the natural (n, 3) layout
    # would save the extra ~24 B/point this XLA transpose costs.
    xyz_t = xyz.T.reshape(3, m_pad, LANE)

    # Explicit scoped-VMEM budget: actual double-buffered blocks + headroom,
    # bounded so it never exceeds what a 64 MiB-VMEM part can grant.
    vmem_limit = int(min(max(2 * _block_bytes(tm) + (8 << 20), 16 << 20),
                         48 << 20))

    out = pl.pallas_call(
        functools.partial(_sh_kernel, degree=degree),
        out_shape=jax.ShapeDtypeStruct((out_dim, m_pad, LANE), out_dtype),
        grid_spec=pltpu.PrefetchScalarGridSpec(
            num_scalar_prefetch=0,
            grid=(m_pad // tm,),
            in_specs=[pl.BlockSpec((3, tm, LANE), lambda i: (0, i, 0))],
            out_specs=pl.BlockSpec((out_dim, tm, LANE), lambda i: (0, i, 0)),
        ),
        compiler_params=pltpu.CompilerParams(
            dimension_semantics=("parallel",),
            vmem_limit_bytes=vmem_limit),
    )(xyz_t)

    flat = out.reshape(out_dim, n_pad)
    if sh_major:
        # SH-major consumer layout: no transpose at all (only a trim slice).
        return flat if n_pad == n else flat[:, :n]

    # PyTorch-compatible (..., out_dim) layout (XLA transpose copy).
    res = flat.T[:n]
    return res.reshape(*batch_shape, out_dim)


def _sh_reference(inp, degree=4):
    """Pure-JAX reference mirroring the PyTorch forward (degrees 1..5)."""
    inp = inp.astype(jnp.float32)
    x, y, z = inp[..., 0], inp[..., 1], inp[..., 2]
    xx, yy, zz = x * x, y * y, z * z
    xy, yz, xz = x * y, y * z, x * z
    cols = [jnp.full_like(x, C0)]
    if degree > 1:
        cols += [-C1 * y, C1 * z, -C1 * x]
        if degree > 2:
            cols += [C2[0] * xy, C2[1] * yz, C2[2] * (2.0 * zz - xx - yy),
                     C2[3] * xz, C2[4] * (xx - yy)]
            if degree > 3:
                cols += [C3[0] * y * (3 * xx - yy), C3[1] * xy * z,
                         C3[2] * y * (4 * zz - xx - yy),
                         C3[3] * z * (2 * zz - 3 * xx - 3 * yy),
                         C3[4] * x * (4 * zz - xx - yy),
                         C3[5] * z * (xx - yy), C3[6] * x * (xx - 3 * yy)]
                if degree > 4:
                    cols += [C4[0] * xy * (xx - yy),
                             C4[1] * yz * (3 * xx - yy),
                             C4[2] * xy * (7 * zz - 1),
                             C4[3] * yz * (7 * zz - 3),
                             C4[4] * (zz * (35 * zz - 30) + 3),
                             C4[5] * xz * (7 * zz - 3),
                             C4[6] * (xx - yy) * (7 * zz - 1),
                             C4[7] * xz * (xx - 3 * yy),
                             C4[8] * (xx * (xx - 3 * yy) - yy * (3 * xx - yy))]
    return jnp.stack(cols, axis=-1)


if __name__ == "__main__":
    key = jax.random.PRNGKey(0)
    k1, k2, k3 = jax.random.split(key, 3)

    # Case 1: degree=4, (2, 4, 16, 3) -> 128 unit directions.
    x1 = jax.random.normal(k1, (2, 4, 16, 3), dtype=jnp.float32)
    x1 = x1 / jnp.linalg.norm(x1, axis=-1, keepdims=True)
    out1 = jax.block_until_ready(sh_encode(x1, degree=4))
    ref1 = _sh_reference(x1, degree=4)
    assert out1.shape == (2, 4, 16, 16), out1.shape
    assert jnp.allclose(out1, ref1, atol=1e-5, rtol=1e-5)

    # Case 1b: SH-major consumer layout (out_dim, N) — no output transpose.
    out1m = jax.block_until_ready(sh_encode(x1, degree=4, sh_major=True))
    assert out1m.shape == (16, 128), out1m.shape
    assert jnp.allclose(out1m, ref1.reshape(-1, 16).T, atol=1e-5, rtol=1e-5)

    # Case 2: degree=5, ragged point count (exercises padding + C4 rows).
    x2 = jax.random.normal(k2, (7, 19, 3), dtype=jnp.float32)
    x2 = x2 / jnp.linalg.norm(x2, axis=-1, keepdims=True)
    out2 = jax.block_until_ready(sh_encode(x2, degree=5))
    ref2 = _sh_reference(x2, degree=5)
    assert out2.shape == (7, 19, 25), out2.shape
    assert jnp.allclose(out2, ref2, atol=1e-5, rtol=1e-5)

    # Case 3: enough points that the tile is split for a 2-step grid
    # (megacore path) — validates multi-step tiling and the padding slice.
    x3 = jax.random.normal(k3, (4096, 3), dtype=jnp.float32)
    x3 = x3 / jnp.linalg.norm(x3, axis=-1, keepdims=True)
    out3 = jax.block_until_ready(sh_encode(x3, degree=4))
    ref3 = _sh_reference(x3, degree=4)
    assert out3.shape == (4096, 16), out3.shape
    assert jnp.allclose(out3, ref3, atol=1e-5, rtol=1e-5)

    print("KERNEL_OK")
</pallas_src>

<mosaic_0001>
module attributes {stable_mosaic.version = 11 : i64} {
  func.func @_sh_kernel(%arg0: i32, %arg1: memref<3x8x128xf32, #tpu.memory_space<vmem>>, %arg2: memref<16x8x128xf32, #tpu.memory_space<vmem>>) attributes {dimension_semantics = [#tpu.dimension_semantics<parallel>], iteration_bounds = array<i64: 1>, scalar_prefetch = 0 : i64, scratch_operands = 0 : i64, tpu.core_type = #tpu.core_type<tc>, window_params = [{transform_indices = @transform_0, window_bounds = array<i64: 3, 8, 128>}, {transform_indices = @transform_1, window_bounds = array<i64: 16, 8, 128>}]} {
    %c0 = arith.constant 0 : index
    %c0_0 = arith.constant 0 : index
    %c0_1 = arith.constant 0 : index
    %0 = vector.load %arg1[%c0, %c0_0, %c0_1] : memref<3x8x128xf32, #tpu.memory_space<vmem>>, vector<1x8x128xf32>
    %1 = vector.shape_cast %0 : vector<1x8x128xf32> to vector<8x128xf32>
    %c1 = arith.constant 1 : index
    %c0_2 = arith.constant 0 : index
    %c0_3 = arith.constant 0 : index
    %2 = vector.load %arg1[%c1, %c0_2, %c0_3] : memref<3x8x128xf32, #tpu.memory_space<vmem>>, vector<1x8x128xf32>
    %3 = vector.shape_cast %2 : vector<1x8x128xf32> to vector<8x128xf32>
    %c2 = arith.constant 2 : index
    %c0_4 = arith.constant 0 : index
    %c0_5 = arith.constant 0 : index
    %4 = vector.load %arg1[%c2, %c0_4, %c0_5] : memref<3x8x128xf32, #tpu.memory_space<vmem>>, vector<1x8x128xf32>
    %5 = vector.shape_cast %4 : vector<1x8x128xf32> to vector<8x128xf32>
    %cst = arith.constant 0.282094806 : f32
    %6 = vector.broadcast %cst : f32 to vector<8x128xf32>
    %c0_6 = arith.constant 0 : index
    %c0_7 = arith.constant 0 : index
    %c0_8 = arith.constant 0 : index
    %7 = vector.load %arg2[%c0_6, %c0_7, %c0_8] : memref<16x8x128xf32, #tpu.memory_space<vmem>>, vector<1x8x128xf32>
    %8 = vector.shape_cast %7 : vector<1x8x128xf32> to vector<8x128xf32>
    %9 = vector.shape_cast %6 : vector<8x128xf32> to vector<1x8x128xf32>
    tpu.vector_store %arg2[%c0_6, %c0_7, %c0_8], %9 {strides = array<i32>} : memref<16x8x128xf32, #tpu.memory_space<vmem>>, vector<1x8x128xf32>,
    %cst_9 = arith.constant -0.488602519 : f32
    %10 = vector.broadcast %cst_9 : f32 to vector<8x128xf32>
    %11 = arith.mulf %10, %3 : vector<8x128xf32>
    %c1_10 = arith.constant 1 : index
    %c0_11 = arith.constant 0 : index
    %c0_12 = arith.constant 0 : index
    %12 = vector.load %arg2[%c1_10, %c0_11, %c0_12] : memref<16x8x128xf32, #tpu.memory_space<vmem>>, vector<1x8x128xf32>
    %13 = vector.shape_cast %12 : vector<1x8x128xf32> to vector<8x128xf32>
    %14 = vector.shape_cast %11 : vector<8x128xf32> to vector<1x8x128xf32>
    tpu.vector_store %arg2[%c1_10, %c0_11, %c0_12], %14 {strides = array<i32>} : memref<16x8x128xf32, #tpu.memory_space<vmem>>, vector<1x8x128xf32>,
    %cst_13 = arith.constant 0.488602519 : f32
    %15 = vector.broadcast %cst_13 : f32 to vector<8x128xf32>
    %16 = arith.mulf %15, %5 : vector<8x128xf32>
    %c2_14 = arith.constant 2 : index
    %c0_15 = arith.constant 0 : index
    %c0_16 = arith.constant 0 : index
    %17 = vector.load %arg2[%c2_14, %c0_15, %c0_16] : memref<16x8x128xf32, #tpu.memory_space<vmem>>, vector<1x8x128xf32>
    %18 = vector.shape_cast %17 : vector<1x8x128xf32> to vector<8x128xf32>
    %19 = vector.shape_cast %16 : vector<8x128xf32> to vector<1x8x128xf32>
    tpu.vector_store %arg2[%c2_14, %c0_15, %c0_16], %19 {strides = array<i32>} : memref<16x8x128xf32, #tpu.memory_space<vmem>>, vector<1x8x128xf32>,
    %cst_17 = arith.constant -0.488602519 : f32
    %20 = vector.broadcast %cst_17 : f32 to vector<8x128xf32>
    %21 = arith.mulf %20, %1 : vector<8x128xf32>
    %c3 = arith.constant 3 : index
    %c0_18 = arith.constant 0 : index
    %c0_19 = arith.constant 0 : index
    %22 = vector.load %arg2[%c3, %c0_18, %c0_19] : memref<16x8x128xf32, #tpu.memory_space<vmem>>, vector<1x8x128xf32>
    %23 = vector.shape_cast %22 : vector<1x8x128xf32> to vector<8x128xf32>
    %24 = vector.shape_cast %21 : vector<8x128xf32> to vector<1x8x128xf32>
    tpu.vector_store %arg2[%c3, %c0_18, %c0_19], %24 {strides = array<i32>} : memref<16x8x128xf32, #tpu.memory_space<vmem>>, vector<1x8x128xf32>,
    %25 = arith.mulf %1, %1 : vector<8x128xf32>
    %26 = arith.mulf %3, %3 : vector<8x128xf32>
    %27 = arith.mulf %5, %5 : vector<8x128xf32>
    %28 = arith.mulf %1, %3 : vector<8x128xf32>
    %29 = arith.mulf %3, %5 : vector<8x128xf32>
    %30 = arith.mulf %1, %5 : vector<8x128xf32>
    %31 = arith.subf %25, %26 : vector<8x128xf32>
    %cst_20 = arith.constant 1.09254849 : f32
    %32 = vector.broadcast %cst_20 : f32 to vector<8x128xf32>
    %33 = arith.mulf %32, %28 : vector<8x128xf32>
    %c4 = arith.constant 4 : index
    %c0_21 = arith.constant 0 : index
    %c0_22 = arith.constant 0 : index
    %34 = vector.load %arg2[%c4, %c0_21, %c0_22] : memref<16x8x128xf32, #tpu.memory_space<vmem>>, vector<1x8x128xf32>
    %35 = vector.shape_cast %34 : vector<1x8x128xf32> to vector<8x128xf32>
    %36 = vector.shape_cast %33 : vector<8x128xf32> to vector<1x8x128xf32>
    tpu.vector_store %arg2[%c4, %c0_21, %c0_22], %36 {strides = array<i32>} : memref<16x8x128xf32, #tpu.memory_space<vmem>>, vector<1x8x128xf32>,
    %cst_23 = arith.constant -1.09254849 : f32
    %37 = vector.broadcast %cst_23 : f32 to vector<8x128xf32>
    %38 = arith.mulf %37, %29 : vector<8x128xf32>
    %c5 = arith.constant 5 : index
    %c0_24 = arith.constant 0 : index
    %c0_25 = arith.constant 0 : index
    %39 = vector.load %arg2[%c5, %c0_24, %c0_25] : memref<16x8x128xf32, #tpu.memory_space<vmem>>, vector<1x8x128xf32>
    %40 = vector.shape_cast %39 : vector<1x8x128xf32> to vector<8x128xf32>
    %41 = vector.shape_cast %38 : vector<8x128xf32> to vector<1x8x128xf32>
    tpu.vector_store %arg2[%c5, %c0_24, %c0_25], %41 {strides = array<i32>} : memref<16x8x128xf32, #tpu.memory_space<vmem>>, vector<1x8x128xf32>,
    %cst_26 = arith.constant 2.000000e+00 : f32
    %42 = vector.broadcast %cst_26 : f32 to vector<8x128xf32>
    %43 = arith.mulf %42, %27 : vector<8x128xf32>
    %44 = arith.subf %43, %25 : vector<8x128xf32>
    %45 = arith.subf %44, %26 : vector<8x128xf32>
    %cst_27 = arith.constant 0.31539157 : f32
    %46 = vector.broadcast %cst_27 : f32 to vector<8x128xf32>
    %47 = arith.mulf %46, %45 : vector<8x128xf32>
    %c6 = arith.constant 6 : index
    %c0_28 = arith.constant 0 : index
    %c0_29 = arith.constant 0 : index
    %48 = vector.load %arg2[%c6, %c0_28, %c0_29] : memref<16x8x128xf32, #tpu.memory_space<vmem>>, vector<1x8x128xf32>
    %49 = vector.shape_cast %48 : vector<1x8x128xf32> to vector<8x128xf32>
    %50 = vector.shape_cast %47 : vector<8x128xf32> to vector<1x8x128xf32>
    tpu.vector_store %arg2[%c6, %c0_28, %c0_29], %50 {strides = array<i32>} : memref<16x8x128xf32, #tpu.memory_space<vmem>>, vector<1x8x128xf32>,
    %cst_30 = arith.constant -1.09254849 : f32
    %51 = vector.broadcast %cst_30 : f32 to vector<8x128xf32>
    %52 = arith.mulf %51, %30 : vector<8x128xf32>
    %c7 = arith.constant 7 : index
    %c0_31 = arith.constant 0 : index
    %c0_32 = arith.constant 0 : index
    %53 = vector.load %arg2[%c7, %c0_31, %c0_32] : memref<16x8x128xf32, #tpu.memory_space<vmem>>, vector<1x8x128xf32>
    %54 = vector.shape_cast %53 : vector<1x8x128xf32> to vector<8x128xf32>
    %55 = vector.shape_cast %52 : vector<8x128xf32> to vector<1x8x128xf32>
    tpu.vector_store %arg2[%c7, %c0_31, %c0_32], %55 {strides = array<i32>} : memref<16x8x128xf32, #tpu.memory_space<vmem>>, vector<1x8x128xf32>,
    %cst_33 = arith.constant 0.546274245 : f32
    %56 = vector.broadcast %cst_33 : f32 to vector<8x128xf32>
    %57 = arith.mulf %56, %31 : vector<8x128xf32>
    %c8 = arith.constant 8 : index
    %c0_34 = arith.constant 0 : index
    %c0_35 = arith.constant 0 : index
    %58 = vector.load %arg2[%c8, %c0_34, %c0_35] : memref<16x8x128xf32, #tpu.memory_space<vmem>>, vector<1x8x128xf32>
    %59 = vector.shape_cast %58 : vector<1x8x128xf32> to vector<8x128xf32>
    %60 = vector.shape_cast %57 : vector<8x128xf32> to vector<1x8x128xf32>
    tpu.vector_store %arg2[%c8, %c0_34, %c0_35], %60 {strides = array<i32>} : memref<16x8x128xf32, #tpu.memory_space<vmem>>, vector<1x8x128xf32>,
    %cst_36 = arith.constant 3.000000e+00 : f32
    %61 = vector.broadcast %cst_36 : f32 to vector<8x128xf32>
    %62 = arith.mulf %61, %25 : vector<8x128xf32>
    %63 = arith.subf %62, %26 : vector<8x128xf32>
    %cst_37 = arith.constant 3.000000e+00 : f32
    %64 = vector.broadcast %cst_37 : f32 to vector<8x128xf32>
    %65 = arith.mulf %64, %26 : vector<8x128xf32>
    %66 = arith.subf %25, %65 : vector<8x128xf32>
    %cst_38 = arith.constant 4.000000e+00 : f32
    %67 = vector.broadcast %cst_38 : f32 to vector<8x128xf32>
    %68 = arith.mulf %67, %27 : vector<8x128xf32>
    %69 = arith.subf %68, %25 : vector<8x128xf32>
    %70 = arith.subf %69, %26 : vector<8x128xf32>
    %cst_39 = arith.constant -0.590043604 : f32
    %71 = vector.broadcast %cst_39 : f32 to vector<8x128xf32>
    %72 = arith.mulf %71, %3 : vector<8x128xf32>
    %73 = arith.mulf %72, %63 : vector<8x128xf32>
    %c9 = arith.constant 9 : index
    %c0_40 = arith.constant 0 : index
    %c0_41 = arith.constant 0 : index
    %74 = vector.load %arg2[%c9, %c0_40, %c0_41] : memref<16x8x128xf32, #tpu.memory_space<vmem>>, vector<1x8x128xf32>
    %75 = vector.shape_cast %74 : vector<1x8x128xf32> to vector<8x128xf32>
    %76 = vector.shape_cast %73 : vector<8x128xf32> to vector<1x8x128xf32>
    tpu.vector_store %arg2[%c9, %c0_40, %c0_41], %76 {strides = array<i32>} : memref<16x8x128xf32, #tpu.memory_space<vmem>>, vector<1x8x128xf32>,
    %cst_42 = arith.constant 2.89061141 : f32
    %77 = vector.broadcast %cst_42 : f32 to vector<8x128xf32>
    %78 = arith.mulf %77, %28 : vector<8x128xf32>
    %79 = arith.mulf %78, %5 : vector<8x128xf32>
    %c10 = arith.constant 10 : index
    %c0_43 = arith.constant 0 : index
    %c0_44 = arith.constant 0 : index
    %80 = vector.load %arg2[%c10, %c0_43, %c0_44] : memref<16x8x128xf32, #tpu.memory_space<vmem>>, vector<1x8x128xf32>
    %81 = vector.shape_cast %80 : vector<1x8x128xf32> to vector<8x128xf32>
    %82 = vector.shape_cast %79 : vector<8x128xf32> to vector<1x8x128xf32>
    tpu.vector_store %arg2[%c10, %c0_43, %c0_44], %82 {strides = array<i32>} : memref<16x8x128xf32, #tpu.memory_space<vmem>>, vector<1x8x128xf32>,
    %cst_45 = arith.constant -0.457045794 : f32
    %83 = vector.broadcast %cst_45 : f32 to vector<8x128xf32>
    %84 = arith.mulf %83, %3 : vector<8x128xf32>
    %85 = arith.mulf %84, %70 : vector<8x128xf32>
    %c11 = arith.constant 11 : index
    %c0_46 = arith.constant 0 : index
    %c0_47 = arith.constant 0 : index
    %86 = vector.load %arg2[%c11, %c0_46, %c0_47] : memref<16x8x128xf32, #tpu.memory_space<vmem>>, vector<1x8x128xf32>
    %87 = vector.shape_cast %86 : vector<1x8x128xf32> to vector<8x128xf32>
    %88 = vector.shape_cast %85 : vector<8x128xf32> to vector<1x8x128xf32>
    tpu.vector_store %arg2[%c11, %c0_46, %c0_47], %88 {strides = array<i32>} : memref<16x8x128xf32, #tpu.memory_space<vmem>>, vector<1x8x128xf32>,
    %cst_48 = arith.constant 0.373176336 : f32
    %89 = vector.broadcast %cst_48 : f32 to vector<8x128xf32>
    %90 = arith.mulf %89, %5 : vector<8x128xf32>
    %cst_49 = arith.constant 2.000000e+00 : f32
    %91 = vector.broadcast %cst_49 : f32 to vector<8x128xf32>
    %92 = arith.mulf %91, %27 : vector<8x128xf32>
    %cst_50 = arith.constant 3.000000e+00 : f32
    %93 = vector.broadcast %cst_50 : f32 to vector<8x128xf32>
    %94 = arith.mulf %93, %25 : vector<8x128xf32>
    %95 = arith.subf %92, %94 : vector<8x128xf32>
    %cst_51 = arith.constant 3.000000e+00 : f32
    %96 = vector.broadcast %cst_51 : f32 to vector<8x128xf32>
    %97 = arith.mulf %96, %26 : vector<8x128xf32>
    %98 = arith.subf %95, %97 : vector<8x128xf32>
    %99 = arith.mulf %90, %98 : vector<8x128xf32>
    %c12 = arith.constant 12 : index
    %c0_52 = arith.constant 0 : index
    %c0_53 = arith.constant 0 : index
    %100 = vector.load %arg2[%c12, %c0_52, %c0_53] : memref<16x8x128xf32, #tpu.memory_space<vmem>>, vector<1x8x128xf32>
    %101 = vector.shape_cast %100 : vector<1x8x128xf32> to vector<8x128xf32>
    %102 = vector.shape_cast %99 : vector<8x128xf32> to vector<1x8x128xf32>
    tpu.vector_store %arg2[%c12, %c0_52, %c0_53], %102 {strides = array<i32>} : memref<16x8x128xf32, #tpu.memory_space<vmem>>, vector<1x8x128xf32>,
    %cst_54 = arith.constant -0.457045794 : f32
    %103 = vector.broadcast %cst_54 : f32 to vector<8x128xf32>
    %104 = arith.mulf %103, %1 : vector<8x128xf32>
    %105 = arith.mulf %104, %70 : vector<8x128xf32>
    %c13 = arith.constant 13 : index
    %c0_55 = arith.constant 0 : index
    %c0_56 = arith.constant 0 : index
    %106 = vector.load %arg2[%c13, %c0_55, %c0_56] : memref<16x8x128xf32, #tpu.memory_space<vmem>>, vector<1x8x128xf32>
    %107 = vector.shape_cast %106 : vector<1x8x128xf32> to vector<8x128xf32>
    %108 = vector.shape_cast %105 : vector<8x128xf32> to vector<1x8x128xf32>
    tpu.vector_store %arg2[%c13, %c0_55, %c0_56], %108 {strides = array<i32>} : memref<16x8x128xf32, #tpu.memory_space<vmem>>, vector<1x8x128xf32>,
    %cst_57 = arith.constant 1.44530571 : f32
    %109 = vector.broadcast %cst_57 : f32 to vector<8x128xf32>
    %110 = arith.mulf %109, %5 : vector<8x128xf32>
    %111 = arith.mulf %110, %31 : vector<8x128xf32>
    %c14 = arith.constant 14 : index
    %c0_58 = arith.constant 0 : index
    %c0_59 = arith.constant 0 : index
    %112 = vector.load %arg2[%c14, %c0_58, %c0_59] : memref<16x8x128xf32, #tpu.memory_space<vmem>>, vector<1x8x128xf32>
    %113 = vector.shape_cast %112 : vector<1x8x128xf32> to vector<8x128xf32>
    %114 = vector.shape_cast %111 : vector<8x128xf32> to vector<1x8x128xf32>
    tpu.vector_store %arg2[%c14, %c0_58, %c0_59], %114 {strides = array<i32>} : memref<16x8x128xf32, #tpu.memory_space<vmem>>, vector<1x8x128xf32>,
    %cst_60 = arith.constant -0.590043604 : f32
    %115 = vector.broadcast %cst_60 : f32 to vector<8x128xf32>
    %116 = arith.mulf %115, %1 : vector<8x128xf32>
    %117 = arith.mulf %116, %66 : vector<8x128xf32>
    %c15 = arith.constant 15 : index
    %c0_61 = arith.constant 0 : index
    %c0_62 = arith.constant 0 : index
    %118 = vector.load %arg2[%c15, %c0_61, %c0_62] : memref<16x8x128xf32, #tpu.memory_space<vmem>>, vector<1x8x128xf32>
    %119 = vector.shape_cast %118 : vector<1x8x128xf32> to vector<8x128xf32>
    %120 = vector.shape_cast %117 : vector<8x128xf32> to vector<1x8x128xf32>
    tpu.vector_store %arg2[%c15, %c0_61, %c0_62], %120 {strides = array<i32>} : memref<16x8x128xf32, #tpu.memory_space<vmem>>, vector<1x8x128xf32>,
    return
  }
  func.func @transform_0(%arg0: i32) -> (i32, i32, i32) {
    %c0_i32 = arith.constant 0 : i32
    %c0_i32_0 = arith.constant 0 : i32
    %c0_i32_1 = arith.constant 0 : i32
    return %c0_i32, %arg0, %c0_i32_0 : i32, i32, i32
  }
  func.func @transform_1(%arg0: i32) -> (i32, i32, i32) {
    %c0_i32 = arith.constant 0 : i32
    %c0_i32_0 = arith.constant 0 : i32
    %c0_i32_1 = arith.constant 0 : i32
    return %c0_i32, %arg0, %c0_i32_0 : i32, i32, i32
  }
}

</mosaic_0001>

<llo_original>
// kernel: tpu_custom_call.1
$region0: #{tpu_custom_call.1}
  #allocation0 [shape = 'u32[]', space=smem, size = 0x4, offset = 0x4, fixed_abs, tag = 'smem constant byte address 0x4 - core index']
  #allocation1 [shape = 'u32[144,128]{1,0:T(1,128)}', space=vmem, size = 0x12000, scoped, tag = 'internal scratch']
  %s0 = inlined_call_operand.hbm [shape: f32[3,8,128], index: 0, kind: input, shape index: {}]
  %s1 = inlined_call_operand.hbm [shape: f32[16,8,128], index: 1, kind: output, shape index: {}]
  %s2 = sld [smem:[#allocation0]]
  $region18: #{tpu_custom_call.1} parent=0
    _
  %s4 = ssub.s32 1, %s2
  %s5 = scalar_select 0, %s4, %s2
  $region1: #{tpu_custom_call.1} parent=0
    #allocation2 [shape = 'u8[12288]{0}', space=vmem, size = 0x3000, scoped, tag = 'input window, operand 0, single buffered']
    #allocation3 [shape = 's32[1]{0}', space=sflag, size = 0x4, scoped, tag = 'scoped memory for tpu_custom_call.1']
    #allocation4 [shape = 's32[1]{0}', space=sflag, size = 0x4, scoped, tag = 'scoped memory for tpu_custom_call.1']
    #allocation5 [shape = 'u8[65536]{0}', space=vmem, size = 0x10000, scoped, tag = 'output window, operand 0, single buffered']
    %6 = vsyncpa [#allocation3], 0
    %7 = vsyncpa [#allocation4], 0
    // Predicated region
    $region2: #{tpu_custom_call.1} parent=1 // pred_check
      _
    $region3: #{tpu_custom_call.1} parent=1 // pred_check_branch
      %9 = sbr.rel (0) target = $region5
    $region4: #{tpu_custom_call.1} parent=1 // pred_region
      %s11 = ssub.s32 384, 384
      %12 = vsyncadd [#allocation3], %s11
      %s13 = sshll.u32 [#allocation2], 4
      %s14 = int_to_ptr.vmem [resolvable:$true] %s13
      %19 = dma.hbm_to_vmem [thread:$0]  %s0, 384, %s14, [#allocation3], 128, 128, 8
    $region5: #{tpu_custom_call.1} parent=1 // pred_fallthru
      _
    // Predicated region
    $region6: #{tpu_custom_call.1} parent=1 // pred_check
      _
    $region7: #{tpu_custom_call.1} parent=1 // pred_check_branch
      %21 = sbr.rel (0) target = $region9
    $region8: #{tpu_custom_call.1} parent=1 // pred_region
      %22 = dma.done [#allocation3], 384
    $region9: #{tpu_custom_call.1} parent=1 // pred_fallthru
      _
    %v23 = vld [vmem:[#allocation2] sm:$0xff]
    %s24 = scalar_lea.vmem [#allocation2], 8
    %v25 = vld [vmem:[%s24] sm:$0xff]
    %s26 = scalar_lea.vmem [#allocation2], 16
    %v27 = vld [vmem:[%s26] sm:$0xff]
    %28 = vst [vmem:[#allocation5] sm:$0xff] 0.2820948
    %v29 = vmul.f32 %v25, -0.48860252
    %s30 = scalar_lea.vmem [#allocation5], 8
    %31 = vst [vmem:[%s30] sm:$0xff] %v29
    %v32 = vmul.f32 %v27, 0.48860252
    %s33 = scalar_lea.vmem [#allocation5], 16
    %34 = vst [vmem:[%s33] sm:$0xff] %v32
    %v35 = vmul.f32 %v23, -0.48860252
    %s36 = scalar_lea.vmem [#allocation5], 24
    %37 = vst [vmem:[%s36] sm:$0xff] %v35
    %v38 = vmul.f32 %v23, %v23
    %v39 = vmul.f32 %v25, %v25
    %v40 = vmul.f32 %v27, %v27
    %v41 = vmul.f32 %v23, %v25
    %v42 = vmul.f32 %v25, %v27
    %v43 = vmul.f32 %v23, %v27
    %v44 = vsub.f32 %v38, %v39
    %v45 = vmul.f32 %v41, 1.0925485
    %s46 = scalar_lea.vmem [#allocation5], 32
    %47 = vst [vmem:[%s46] sm:$0xff] %v45
    %v48 = vmul.f32 %v42, -1.0925485
    %s49 = scalar_lea.vmem [#allocation5], 40
    %50 = vst [vmem:[%s49] sm:$0xff] %v48
    %v51 = vmul.f32 %v40, 2.0
    %v52 = vsub.f32 %v51, %v38
    %v53 = vsub.f32 %v52, %v39
    %v54 = vmul.f32 %v53, 0.31539157
    %s55 = scalar_lea.vmem [#allocation5], 48
    %56 = vst [vmem:[%s55] sm:$0xff] %v54
    %v57 = vmul.f32 %v43, -1.0925485
    %s58 = scalar_lea.vmem [#allocation5], 56
    %59 = vst [vmem:[%s58] sm:$0xff] %v57
    %v60 = vmul.f32 %v44, 0.54627424
    %s61 = scalar_lea.vmem [#allocation5], 64
    %62 = vst [vmem:[%s61] sm:$0xff] %v60
    %v63 = vmul.f32 %v38, 3.0
    %v64 = vsub.f32 %v63, %v39
    %v65 = vmul.f32 %v39, 3.0
    %v66 = vsub.f32 %v38, %v65
    %v67 = vmul.f32 %v40, 4.0
    %v68 = vsub.f32 %v67, %v38
    %v69 = vsub.f32 %v68, %v39
    %v70 = vmul.f32 %v25, -0.5900436
    %v71 = vmul.f32 %v70, %v64
    %s72 = scalar_lea.vmem [#allocation5], 72
    %73 = vst [vmem:[%s72] sm:$0xff] %v71
    %v74 = vmul.f32 %v41, 2.8906114
    %v75 = vmul.f32 %v74, %v27
    %s76 = scalar_lea.vmem [#allocation5], 80
    %77 = vst [vmem:[%s76] sm:$0xff] %v75
    %v78 = vmul.f32 %v25, -0.4570458
    %v79 = vmul.f32 %v78, %v69
    %s80 = scalar_lea.vmem [#allocation5], 88
    %81 = vst [vmem:[%s80] sm:$0xff] %v79
    %v82 = vmul.f32 %v27, 0.37317634
    %v83 = vsub.f32 %v51, %v63
    %v84 = vsub.f32 %v83, %v65
    %v85 = vmul.f32 %v82, %v84
    %s86 = scalar_lea.vmem [#allocation5], 96
    %87 = vst [vmem:[%s86] sm:$0xff] %v85
    %v88 = vmul.f32 %v23, -0.4570458
    %v89 = vmul.f32 %v88, %v69
    %s90 = scalar_lea.vmem [#allocation5], 104
    %91 = vst [vmem:[%s90] sm:$0xff] %v89
    %v92 = vmul.f32 %v27, 1.4453057
    %v93 = vmul.f32 %v92, %v44
    %s94 = scalar_lea.vmem [#allocation5], 112
    %95 = vst [vmem:[%s94] sm:$0xff] %v93
    %v96 = vmul.f32 %v23, -0.5900436
    %v97 = vmul.f32 %v96, %v66
    %s98 = scalar_lea.vmem [#allocation5], 120
    %99 = vst [vmem:[%s98] sm:$0xff] %v97
    // Predicated region
    $region10: #{tpu_custom_call.1} parent=1 // pred_check
      _
    $region11: #{tpu_custom_call.1} parent=1 // pred_check_branch
      %101 = sbr.rel (0) target = $region13
    $region12: #{tpu_custom_call.1} parent=1 // pred_region
      %s103 = ssub.s32 2048, 2048
      %104 = vsyncadd [#allocation4], %s103
      %s105 = sshll.u32 [#allocation5], 4
      %s106 = int_to_ptr.vmem [resolvable:$true] %s105
      %111 = dma.vmem_to_hbm [thread:$0]  %s106, 2048, %s1, [#allocation4], 128, 128, 8
    $region13: #{tpu_custom_call.1} parent=1 // pred_fallthru
      _
    // Predicated region
    $region14: #{tpu_custom_call.1} parent=1 // pred_check
      _
    $region15: #{tpu_custom_call.1} parent=1 // pred_check_branch
      %113 = sbr.rel (0) target = $region17
    $region16: #{tpu_custom_call.1} parent=1 // pred_region
      %114 = dma.done [#allocation4], 2048
    $region17: #{tpu_custom_call.1} parent=1 // pred_fallthru
      _
    %115 = vsyncpa [#allocation3], 1
    %116 = vsyncpa [#allocation4], 1

</llo_original>
